<compile_context>
chip_gen: v5e
topology: v5e:2x2
jax: 0.10.0
libtpu: 0.0.40
codegen_flags: <defaults>
</compile_context>

<pallas_src>
import functools

import numpy as np

import jax
import jax.numpy as jnp
from jax import lax
from jax.experimental import pallas as pl
from jax.experimental.pallas import tpu as pltpu


def _round_up(x: int, m: int) -> int:
    return (x + m - 1) // m * m


def _cdiv(a: int, b: int) -> int:
    return -(-a // b)


# ---------------------------------------------------------------------------
# Kernels
# ---------------------------------------------------------------------------
def _gather_kernel_single_k(kmap_ref, cnt_ref, idx_ref, x_ref, o_ref,
                            *, tk: int, precision):
    """Every output tile needs exactly one K block (num_k == 1); 2-D grid."""
    del cnt_ref  # all counts are 1
    j = pl.program_id(1)
    base = kmap_ref[j] * tk
    local = idx_ref[...] - base                                # (1, tn)
    col_iota = lax.broadcasted_iota(jnp.int32, (tk, 1), 0)     # (tk, 1)
    onehot = (col_iota == local).astype(x_ref.dtype)           # (tk, tn)
    o_ref[...] = jnp.dot(x_ref[...], onehot,
                         preferred_element_type=jnp.float32,
                         precision=precision).astype(o_ref.dtype)


def _gather_kernel_multi_k(kmap_ref, cnt_ref, idx_ref, x_ref, o_ref,
                           *, tk: int, num_k: int, precision):
    """General case: accumulate over the K blocks listed in kmap for tile j.

    The output block index is independent of k, so o_ref is resident across
    the (arbitrary) K axis and we accumulate directly into it -- no f32
    scratch, no zero-init store (k == 0 is always an active step).
    """
    j = pl.program_id(1)
    k = pl.program_id(2)

    @pl.when(k < cnt_ref[j])           # skip compute on (rare) dead steps
    def _active():
        base = kmap_ref[j * num_k + k] * tk
        local = idx_ref[...] - base                            # (1, tn)
        col_iota = lax.broadcasted_iota(jnp.int32, (tk, 1), 0)  # (tk, 1)
        onehot = (col_iota == local).astype(x_ref.dtype)       # (tk, tn)
        contrib = jnp.dot(x_ref[...], onehot,
                          preferred_element_type=jnp.float32,
                          precision=precision).astype(o_ref.dtype)

        @pl.when(k == 0)
        def _first():
            o_ref[...] = contrib

        @pl.when(k > 0)
        def _rest():
            o_ref[...] += contrib


# ---------------------------------------------------------------------------
# Wrapper
# ---------------------------------------------------------------------------
def _choose_tiles(B_pad: int, IN: int, OUT: int, sublane: int):
    # K tile: prefer a tk that divides IN exactly (no wrapper-side pad of x).
    if IN <= 512:
        tk = IN
    else:
        tk = 512
        for cand in (512, 384, 256, 128):
            if IN % cand == 0:
                tk = cand
                break

    # Out tile: lane-dense and as large as reasonable (fewer re-reads of x),
    # while keeping the padded OUT small.
    TN_MAX = 1024
    out128 = _round_up(OUT, 128)
    if out128 <= TN_MAX:
        tn = out128
    else:
        tn, best_pad = 128, None
        for cand in range(TN_MAX, 0, -128):
            padded = _round_up(OUT, cand)
            if best_pad is None or padded < best_pad:
                tn, best_pad = cand, padded

    # Batch tile: sublane-aligned, up to 512 rows per MXU pass.
    tb = min(512, B_pad)
    return tb, tn, tk


def digital_mapper_eval_only_v2(x: jax.Array, indexes) -> jax.Array:
    """JAX/Pallas equivalent of DigitalMapper_eval_only_v2.forward.

    `indexes` must be a concrete (non-traced) integer vector -- it is a fixed
    eval-only parameter of the module, so the K-block table is built on host.
    """
    assert x.ndim == 2, "input must be rank-2 (batch, in_features)"
    B, IN = x.shape

    idx_np = np.asarray(jax.device_get(indexes)).astype(np.int64)
    assert idx_np.ndim == 1, "indexes must be a rank-1 tensor"
    OUT = int(idx_np.shape[0])
    if OUT == 0:
        return x[:, :0]
    if idx_np.max() >= IN or idx_np.min() < 0:
        raise ValueError("indexes out of range for in_features")

    itemsize = x.dtype.itemsize
    sublane = {4: 8, 2: 16, 1: 32}.get(itemsize, 8)
    B_pad = _round_up(B, sublane)                   # only sublane padding

    tb, tn, tk = _choose_tiles(B_pad, IN, OUT, sublane)
    OUT_pad = _round_up(OUT, tn)
    nj = OUT_pad // tn
    nb = _cdiv(B_pad, tb)

    # v7x megacore: keep at least two independent (batch, out) tiles so both
    # TensorCores get work; prefer splitting the out axis over batch.
    if nb * nj < 2:
        if nj == 1 and OUT_pad >= 256 and (OUT_pad // 2) % 128 == 0:
            tn = OUT_pad // 2
            nj = 2
        elif nb == 1 and B_pad >= 2 * sublane:
            tb = _round_up(_cdiv(B_pad, 2), sublane)
            nb = _cdiv(B_pad, tb)

    # ---- operand padding (only when unavoidable; zeros, never garbage) -----
    IN_pad = _round_up(IN, tk)
    x_p = x
    if B_pad != B or IN_pad != IN:
        x_p = jnp.pad(x, ((0, B_pad - B), (0, IN_pad - IN)))

    idx32 = idx_np.astype(np.int32)
    if OUT_pad != OUT:
        # edge padding keeps padded columns inside an already-needed K block
        idx32 = np.pad(idx32, (0, OUT_pad - OUT), mode="edge")
    idx2d = jnp.asarray(idx32.reshape(1, OUT_pad))

    # ---- host-side per-out-tile table of needed K blocks -------------------
    blocks = idx32.reshape(nj, tn) // tk
    uniq = [np.unique(blocks[j]) for j in range(nj)]
    counts_np = np.array([u.shape[0] for u in uniq], dtype=np.int32)
    num_k = int(counts_np.max())
    kmap_np = np.empty((nj, num_k), dtype=np.int32)
    for j, u in enumerate(uniq):
        kmap_np[j, :u.shape[0]] = u
        # repeat the last valid block on dead steps -> Pallas skips the DMA
        kmap_np[j, u.shape[0]:] = u[-1]
    kmap = jnp.asarray(kmap_np.reshape(-1))
    counts = jnp.asarray(counts_np)

    # ---- MXU precision: f32 gather must be bit-exact -----------------------
    precision = lax.Precision.HIGHEST if x.dtype == jnp.float32 else None

    # ---- cost estimate (real dtype size, actually-fetched bytes) ------------
    active_steps = nb * int(counts_np.sum())
    flops = 2 * tb * tn * tk * active_steps
    bytes_accessed = (active_steps * tb * tk * itemsize     # x block fetches
                      + B_pad * OUT_pad * itemsize          # output writes
                      + OUT_pad * 4 + kmap_np.size * 4 + nj * 4)
    cost = pl.CostEstimate(flops=int(flops), transcendentals=0,
                           bytes_accessed=int(bytes_accessed))

    out_shape = jax.ShapeDtypeStruct((B_pad, OUT_pad), x.dtype)

    if num_k == 1:
        kernel = functools.partial(_gather_kernel_single_k, tk=tk,
                                   precision=precision)
        grid_spec = pltpu.PrefetchScalarGridSpec(
            num_scalar_prefetch=2,                           # kmap, counts
            grid=(nb, nj),
            in_specs=[
                pl.BlockSpec((1, tn), lambda i, j, km, ct: (0, j)),
                pl.BlockSpec((tb, tk), lambda i, j, km, ct: (i, km[j])),
            ],
            out_specs=pl.BlockSpec((tb, tn), lambda i, j, km, ct: (i, j)),
        )
        dims = ("parallel", "parallel")
    else:
        kernel = functools.partial(_gather_kernel_multi_k, tk=tk, num_k=num_k,
                                   precision=precision)
        grid_spec = pltpu.PrefetchScalarGridSpec(
            num_scalar_prefetch=2,                           # kmap, counts
            grid=(nb, nj, num_k),
            in_specs=[
                pl.BlockSpec((1, tn), lambda i, j, k, km, ct: (0, j)),
                pl.BlockSpec((tb, tk),
                             lambda i, j, k, km, ct: (i, km[j * num_k + k])),
            ],
            out_specs=pl.BlockSpec((tb, tn), lambda i, j, k, km, ct: (i, j)),
        )
        dims = ("parallel", "parallel", "arbitrary")

    out_p = pl.pallas_call(
        kernel,
        out_shape=out_shape,
        grid_spec=grid_spec,
        compiler_params=pltpu.CompilerParams(
            dimension_semantics=dims,
            vmem_limit_bytes=32 * 1024 * 1024),   # fits v5e/v6e/v7x comfortably
        cost_estimate=cost,
    )(kmap, counts, idx2d, x_p)

    if B_pad == B and OUT_pad == OUT:
        return out_p
    return out_p[:B, :OUT]


if __name__ == "__main__":
    key = jax.random.PRNGKey(0)
    k1, k2, k3, k4, k5, k6 = jax.random.split(key, 6)

    # --- test 1: module-sized shapes (single K block, tiny batch) -----------
    batch, in_features, out_features = 2, 32, 8
    indexes = jax.random.randint(k1, (out_features,), 0, in_features,
                                 dtype=jnp.int32)
    x = jax.random.normal(k2, (batch, in_features), dtype=jnp.float32)
    out = jax.block_until_ready(digital_mapper_eval_only_v2(x, indexes))
    ref = x[:, indexes]
    assert out.shape == (batch, out_features)
    assert jnp.array_equal(out, ref), "Pallas gather does not match reference"

    # --- test 2: multi-K-block accumulation + out-axis split ----------------
    b2, in2, out2 = 16, 1536, 200
    idx2 = jax.random.randint(k3, (out2,), 0, in2, dtype=jnp.int32)
    x2 = jax.random.normal(k4, (b2, in2), dtype=jnp.float32)
    out_2 = jax.block_until_ready(digital_mapper_eval_only_v2(x2, idx2))
    assert out_2.shape == (b2, out2)
    assert jnp.array_equal(out_2, x2[:, idx2]), "multi-K gather mismatch"

    # --- test 3: bf16 input (native bf16 MXU path) ---------------------------
    b3, in3, out3 = 8, 256, 64
    idx3 = jax.random.randint(k5, (out3,), 0, in3, dtype=jnp.int32)
    x3 = jax.random.normal(k6, (b3, in3), dtype=jnp.float32).astype(jnp.bfloat16)
    out_3 = jax.block_until_ready(digital_mapper_eval_only_v2(x3, idx3))
    assert out_3.shape == (b3, out3)
    assert jnp.array_equal(out_3, x3[:, idx3]), "bf16 gather mismatch"

    print("KERNEL_OK")
</pallas_src>

<mosaic_0001>
module attributes {stable_mosaic.version = 11 : i64} {
  func.func @_gather_kernel_single_k(%arg0: i32, %arg1: i32, %arg2: memref<1xi32, #tpu.memory_space<smem>>, %arg3: memref<1xi32, #tpu.memory_space<smem>>, %arg4: memref<1x128xi32, #tpu.memory_space<vmem>>, %arg5: memref<8x32xf32, #tpu.memory_space<vmem>>, %arg6: memref<8x128xf32, #tpu.memory_space<vmem>>) attributes {dimension_semantics = [#tpu.dimension_semantics<parallel>, #tpu.dimension_semantics<parallel>], iteration_bounds = array<i64: 1, 1>, scalar_prefetch = 2 : i64, scratch_operands = 0 : i64, tpu.core_type = #tpu.core_type<tc>, window_params = [{transform_indices = @transform_0, window_bounds = array<i64: 1, 128>}, {transform_indices = @transform_1, window_bounds = array<i64: 8, 32>}, {transform_indices = @transform_2, window_bounds = array<i64: 8, 128>}]} {
    %0 = arith.index_cast %arg1 : i32 to index
    %1 = memref.load %arg2[%0] : memref<1xi32, #tpu.memory_space<smem>>
    %c32_i32 = arith.constant 32 : i32
    %2 = arith.muli %1, %c32_i32 : i32
    %c0 = arith.constant 0 : index
    %c0_0 = arith.constant 0 : index
    %3 = vector.load %arg4[%c0, %c0_0] : memref<1x128xi32, #tpu.memory_space<vmem>>, vector<1x128xi32>
    %4 = vector.broadcast %2 : i32 to vector<1x128xi32>
    %5 = arith.subi %3, %4 : vector<1x128xi32>
    %6 = tpu.iota {dimensions = array<i32: 0>} : vector<32x1xi32>
    %7 = vector.broadcast %6 : vector<32x1xi32> to vector<32x128xi32>
    %8 = vector.broadcast %5 : vector<1x128xi32> to vector<32x128xi32>
    %9 = arith.cmpi eq, %7, %8 : vector<32x128xi32>
    %10 = arith.extui %9 : vector<32x128xi1> to vector<32x128xi32>
    %11 = arith.sitofp %10 : vector<32x128xi32> to vector<32x128xf32>
    %c0_1 = arith.constant 0 : index
    %c0_2 = arith.constant 0 : index
    %12 = vector.load %arg5[%c0_1, %c0_2] : memref<8x32xf32, #tpu.memory_space<vmem>>, vector<8x32xf32>
    %cst = arith.constant dense<0.000000e+00> : vector<8x128xf32>
    %13 = tpu.matmul %12, %11, %cst {dimension_numbers = #tpu.dot_dimension_numbers<[1], [0], [0], [1], [0, 0, 1, 1], [], []>, precision = #tpu.contract_precision<fp32>} : vector<8x32xf32>, vector<32x128xf32>, vector<8x128xf32> -> vector<8x128xf32>
    %c0_3 = arith.constant 0 : index
    %c0_4 = arith.constant 0 : index
    %14 = vector.load %arg6[%c0_3, %c0_4] : memref<8x128xf32, #tpu.memory_space<vmem>>, vector<8x128xf32>
    tpu.vector_store %arg6[%c0_3, %c0_4], %13 {strides = array<i32>} : memref<8x128xf32, #tpu.memory_space<vmem>>, vector<8x128xf32>,
    return
  }
  func.func @transform_0(%arg0: i32, %arg1: i32, %arg2: memref<1xi32, #tpu.memory_space<smem>>, %arg3: memref<1xi32, #tpu.memory_space<smem>>) -> (i32, i32) {
    %c0_i32 = arith.constant 0 : i32
    %c0_i32_0 = arith.constant 0 : i32
    return %c0_i32, %arg1 : i32, i32
  }
  func.func @transform_1(%arg0: i32, %arg1: i32, %arg2: memref<1xi32, #tpu.memory_space<smem>>, %arg3: memref<1xi32, #tpu.memory_space<smem>>) -> (i32, i32) {
    %0 = arith.index_cast %arg1 : i32 to index
    %1 = memref.load %arg2[%0] : memref<1xi32, #tpu.memory_space<smem>>
    %c0_i32 = arith.constant 0 : i32
    return %arg0, %1 : i32, i32
  }
  func.func @transform_2(%arg0: i32, %arg1: i32, %arg2: memref<1xi32, #tpu.memory_space<smem>>, %arg3: memref<1xi32, #tpu.memory_space<smem>>) -> (i32, i32) {
    %c0_i32 = arith.constant 0 : i32
    return %arg0, %arg1 : i32, i32
  }
}

</mosaic_0001>

<llo_original>
// kernel: tpu_custom_call.1
$region0: #{tpu_custom_call.1}
  #allocation0 [shape = 'u32[]', space=smem, size = 0x4, offset = 0x4, fixed_abs, tag = 'smem constant byte address 0x4 - core index']
  #allocation1 [shape = 'u32[72,128]{1,0:T(1,128)}', space=vmem, size = 0x9000, scoped, tag = 'internal scratch']
  #allocation2 [shape = 's32[1]{0}', space=sflag, size = 0x4, scoped, tag = 'scoped memory for tpu_custom_call.1']
  #allocation3 [shape = 's32[1]{0:T(128)S(6)}', space=smem, size = 0x200, scoped, tag = 'prefetched SMEM operand 0']
  #allocation4 [shape = 's32[1]{0:T(128)S(6)}', space=smem, size = 0x200, scoped, tag = 'prefetched SMEM operand 1']
  %s0 = inlined_call_operand.<no memory space> [shape: s32[1], index: 0, kind: input, shape index: {}]
  %s1 = inlined_call_operand.<no memory space> [shape: s32[1], index: 1, kind: input, shape index: {}]
  %s2 = inlined_call_operand.vmem [shape: s32[1,128], index: 2, kind: input, shape index: {}]
  %s3 = inlined_call_operand.hbm [shape: f32[8,32], index: 3, kind: input, shape index: {}]
  %s4 = inlined_call_operand.hbm [shape: f32[8,128], index: 4, kind: output, shape index: {}]
  %s5 = sld [smem:[#allocation0]]
  $region22: #{tpu_custom_call.1} parent=0
    _
  %s7 = ssub.s32 1, %s5
  %s8 = scalar_select 0, %s7, %s5
  %9 = sst [smem:[#allocation3]] %s0
  %10 = sst [smem:[#allocation4]] %s1
  $region1: #{tpu_custom_call.1} parent=0
    #allocation5 [shape = 'u8[4096]{0}', space=vmem, size = 0x1000, scoped, tag = 'input window, operand 3, single buffered']
    #allocation6 [shape = 's32[1]{0}', space=sflag, size = 0x4, scoped, tag = 'scoped memory for tpu_custom_call.1']
    #allocation7 [shape = 's32[1]{0}', space=sflag, size = 0x4, scoped, tag = 'scoped memory for tpu_custom_call.1']
    #allocation8 [shape = 'u8[4096]{0}', space=vmem, size = 0x1000, scoped, tag = 'output window, operand 0, single buffered']
    %11 = vsyncpa [#allocation6], 0
    %12 = vsyncpa [#allocation7], 0
    // Predicated region
    $region2: #{tpu_custom_call.1} parent=1 // pred_check
      _
    $region3: #{tpu_custom_call.1} parent=1 // pred_check_branch
      %14 = sbr.rel (0) target = $region5
    $region4: #{tpu_custom_call.1} parent=1 // pred_region
      _
    $region5: #{tpu_custom_call.1} parent=1 // pred_fallthru
      _
    // Predicated region
    $region6: #{tpu_custom_call.1} parent=1 // pred_check
      _
    $region7: #{tpu_custom_call.1} parent=1 // pred_check_branch
      %16 = sbr.rel (0) target = $region9
    $region8: #{tpu_custom_call.1} parent=1 // pred_region
      %s17 = sld [smem:[#allocation3]]
      %19 = vsyncadd [#allocation6], 0
      %s20 = smul.addr %s17, 8
      %s21 = scalar_lea.hbm %s3, %s20
      %s23 = sshll.u32 %s21, 4
      %s24 = int_to_ptr.hbm [resolvable:$true] %s23
      %s25 = sshll.u32 [#allocation5], 4
      %s26 = int_to_ptr.vmem [resolvable:$true] %s25
      %28 = dma.hbm_to_vmem [thread:$0]  %s24, 128, %s26, [#allocation6]
    $region9: #{tpu_custom_call.1} parent=1 // pred_fallthru
      _
    // Predicated region
    $region10: #{tpu_custom_call.1} parent=1 // pred_check
      _
    $region11: #{tpu_custom_call.1} parent=1 // pred_check_branch
      %30 = sbr.rel (0) target = $region13
    $region12: #{tpu_custom_call.1} parent=1 // pred_region
      %32 = dma.done [#allocation6], 128
    $region13: #{tpu_custom_call.1} parent=1 // pred_fallthru
      _
    %s33 = sld [smem:[#allocation3]]
    %s34 = sld [smem:[#allocation3]]
    %s35 = smul.u32 %s34, 32
    %v36 = vld [vmem:[%s2] sm:$0x1]
    %v37 = vstv %s35
    %v38 = vsub.s32 %v36, %v37
    %v39 = vlaneseq
    %v40 = vshrl.u32 %v39, 7
    %v41 = vadd.s32 %v40, 8
    %v42 = vadd.s32 %v40, 16
    %v43 = vadd.s32 %v40, 24
    %v44 = vperm.slane %v38, 0
    %vm45 = vcmp.eq.s32.totalorder %v40, %v44
    %vm46 = vcmp.eq.s32.totalorder %v41, %v44
    %vm47 = vcmp.eq.s32.totalorder %v42, %v44
    %vm48 = vcmp.eq.s32.totalorder %v43, %v44
    %v49 = vsel %vm45, 1, 0
    %v50 = vsel %vm46, 1, 0
    %v51 = vsel %vm47, 1, 0
    %v52 = vsel %vm48, 1, 0
    %v53 = vcvt.s32.f32 %v49
    %v54 = vcvt.s32.f32 %v50
    %v55 = vcvt.s32.f32 %v51
    %v56 = vcvt.s32.f32 %v52
    %v57 = vld [vmem:[#allocation5] sm:$0xff]
    %vm58 = vcmask 261120
    %v60 = vsel %vm58, %v57, 0
    %62 = vmatpush.msra.mxu0 0.0
    %63 = vmatpush.msra.mxu0 0.0
    %64 = vmatpush.msra.mxu0 0.0
    %65 = vmatpush.msra.mxu0 0.0
    %66 = vmatpush.msra.mxu0 0.0
    %67 = vmatpush.msra.mxu0 0.0
    %68 = vmatpush.msra.mxu0 0.0
    %69 = vmatpush.msra.mxu0 0.0
    %70 = vmatpush.msra.mxu0 0.0
    %71 = vmatpush.msra.mxu0 0.0
    %72 = vmatpush.msra.mxu0 0.0
    %73 = vmatpush.msra.mxu0 0.0
    %v74 = vand.u32 %v56, 4294901760
    %75 = vmatpush.msra.mxu0 %v74
    %v76 = vand.u32 %v55, 4294901760
    %77 = vmatpush.msra.mxu0 %v76
    %v78 = vand.u32 %v54, 4294901760
    %79 = vmatpush.msra.mxu0 %v78
    %v80 = vand.u32 %v53, 4294901760
    %81 = vmatpush.msra.mxu0 %v80
    %v82 = vand.u32 %v60, 4294901760
    %v83 = vsub.f32 %v60, %v82
    %v84 = vand.u32 %v83, 4294901760
    %v85 = vsub.f32 %v83, %v84
    %v86 = vand.u32 %v85, 4294901760
    %87 = vmatmul.f32.gmra.mxu0 %v86
    %v88 = vpop.f32.mrf.mxu0
    %v89 = vadd.f32 0.0, %v88
    %90 = vdwg.mxu0
    %91 = vmatpush.msra.mxu0 0.0
    %92 = vmatpush.msra.mxu0 0.0
    %93 = vmatpush.msra.mxu0 0.0
    %94 = vmatpush.msra.mxu0 0.0
    %95 = vmatpush.msra.mxu0 0.0
    %96 = vmatpush.msra.mxu0 0.0
    %97 = vmatpush.msra.mxu0 0.0
    %98 = vmatpush.msra.mxu0 0.0
    %99 = vmatpush.msra.mxu0 0.0
    %100 = vmatpush.msra.mxu0 0.0
    %101 = vmatpush.msra.mxu0 0.0
    %102 = vmatpush.msra.mxu0 0.0
    %v103 = vand.u32 %v56, 4294901760
    %v104 = vsub.f32 %v56, %v103
    %v105 = vand.u32 %v104, 4294901760
    %v106 = vsub.f32 %v104, %v105
    %v107 = vand.u32 %v106, 4294901760
    %108 = vmatpush.msra.mxu0 %v107
    %v109 = vand.u32 %v55, 4294901760
    %v110 = vsub.f32 %v55, %v109
    %v111 = vand.u32 %v110, 4294901760
    %v112 = vsub.f32 %v110, %v111
    %v113 = vand.u32 %v112, 4294901760
    %114 = vmatpush.msra.mxu0 %v113
    %v115 = vand.u32 %v54, 4294901760
    %v116 = vsub.f32 %v54, %v115
    %v117 = vand.u32 %v116, 4294901760
    %v118 = vsub.f32 %v116, %v117
    %v119 = vand.u32 %v118, 4294901760
    %120 = vmatpush.msra.mxu0 %v119
    %v121 = vand.u32 %v53, 4294901760
    %v122 = vsub.f32 %v53, %v121
    %v123 = vand.u32 %v122, 4294901760
    %v124 = vsub.f32 %v122, %v123
    %v125 = vand.u32 %v124, 4294901760
    %126 = vmatpush.msra.mxu0 %v125
    %v127 = vand.u32 %v60, 4294901760
    %128 = vmatmul.f32.gmra.mxu0 %v127
    %v129 = vpop.f32.mrf.mxu0
    %v130 = vadd.f32 %v89, %v129
    %131 = vdwg.mxu0
    %132 = vmatpush.msra.mxu0 0.0
    %133 = vmatpush.msra.mxu0 0.0
    %134 = vmatpush.msra.mxu0 0.0
    %135 = vmatpush.msra.mxu0 0.0
    %136 = vmatpush.msra.mxu0 0.0
    %137 = vmatpush.msra.mxu0 0.0
    %138 = vmatpush.msra.mxu0 0.0
    %139 = vmatpush.msra.mxu0 0.0
    %140 = vmatpush.msra.mxu0 0.0
    %141 = vmatpush.msra.mxu0 0.0
    %142 = vmatpush.msra.mxu0 0.0
    %143 = vmatpush.msra.mxu0 0.0
    %v144 = vand.u32 %v56, 4294901760
    %v145 = vsub.f32 %v56, %v144
    %146 = vmatpush.msra.mxu0 %v145
    %v147 = vand.u32 %v55, 4294901760
    %v148 = vsub.f32 %v55, %v147
    %149 = vmatpush.msra.mxu0 %v148
    %v150 = vand.u32 %v54, 4294901760
    %v151 = vsub.f32 %v54, %v150
    %152 = vmatpush.msra.mxu0 %v151
    %v153 = vand.u32 %v53, 4294901760
    %v154 = vsub.f32 %v53, %v153
    %155 = vmatpush.msra.mxu0 %v154
    %v156 = vand.u32 %v60, 4294901760
    %v157 = vsub.f32 %v60, %v156
    %158 = vmatmul.f32.gmra.mxu0 %v157
    %v159 = vpop.f32.mrf.mxu0
    %v160 = vadd.f32 %v130, %v159
    %161 = vdwg.mxu0
    %162 = vmatpush.msra.mxu0 0.0
    %163 = vmatpush.msra.mxu0 0.0
    %164 = vmatpush.msra.mxu0 0.0
    %165 = vmatpush.msra.mxu0 0.0
    %166 = vmatpush.msra.mxu0 0.0
    %167 = vmatpush.msra.mxu0 0.0
    %168 = vmatpush.msra.mxu0 0.0
    %169 = vmatpush.msra.mxu0 0.0
    %170 = vmatpush.msra.mxu0 0.0
    %171 = vmatpush.msra.mxu0 0.0
    %172 = vmatpush.msra.mxu0 0.0
    %173 = vmatpush.msra.mxu0 0.0
    %v174 = vand.u32 %v56, 4294901760
    %175 = vmatpush.msra.mxu0 %v174
    %v176 = vand.u32 %v55, 4294901760
    %177 = vmatpush.msra.mxu0 %v176
    %v178 = vand.u32 %v54, 4294901760
    %179 = vmatpush.msra.mxu0 %v178
    %v180 = vand.u32 %v53, 4294901760
    %181 = vmatpush.msra.mxu0 %v180
    %v182 = vand.u32 %v60, 4294901760
    %v183 = vsub.f32 %v60, %v182
    %v184 = vand.u32 %v183, 4294901760
    %185 = vmatmul.f32.gmra.mxu0 %v184
    %v186 = vpop.f32.mrf.mxu0
    %v187 = vadd.f32 %v160, %v186
    %188 = vdwg.mxu0
    %189 = vmatpush.msra.mxu0 0.0
    %190 = vmatpush.msra.mxu0 0.0
    %191 = vmatpush.msra.mxu0 0.0
    %192 = vmatpush.msra.mxu0 0.0
    %193 = vmatpush.msra.mxu0 0.0
    %194 = vmatpush.msra.mxu0 0.0
    %195 = vmatpush.msra.mxu0 0.0
    %196 = vmatpush.msra.mxu0 0.0
    %197 = vmatpush.msra.mxu0 0.0
    %198 = vmatpush.msra.mxu0 0.0
    %199 = vmatpush.msra.mxu0 0.0
    %200 = vmatpush.msra.mxu0 0.0
    %v201 = vand.u32 %v56, 4294901760
    %v202 = vsub.f32 %v56, %v201
    %v203 = vand.u32 %v202, 4294901760
    %204 = vmatpush.msra.mxu0 %v203
    %v205 = vand.u32 %v55, 4294901760
    %v206 = vsub.f32 %v55, %v205
    %v207 = vand.u32 %v206, 4294901760
    %208 = vmatpush.msra.mxu0 %v207
    %v209 = vand.u32 %v54, 4294901760
    %v210 = vsub.f32 %v54, %v209
    %v211 = vand.u32 %v210, 4294901760
    %212 = vmatpush.msra.mxu0 %v211
    %v213 = vand.u32 %v53, 4294901760
    %v214 = vsub.f32 %v53, %v213
    %v215 = vand.u32 %v214, 4294901760
    %216 = vmatpush.msra.mxu0 %v215
    %v217 = vand.u32 %v60, 4294901760
    %218 = vmatmul.f32.gmra.mxu0 %v217
    %v219 = vpop.f32.mrf.mxu0
    %v220 = vadd.f32 %v187, %v219
    %221 = vdwg.mxu0
    %222 = vmatpush.msra.mxu0 0.0
    %223 = vmatpush.msra.mxu0 0.0
    %224 = vmatpush.msra.mxu0 0.0
    %225 = vmatpush.msra.mxu0 0.0
    %226 = vmatpush.msra.mxu0 0.0
    %227 = vmatpush.msra.mxu0 0.0
    %228 = vmatpush.msra.mxu0 0.0
    %229 = vmatpush.msra.mxu0 0.0
    %230 = vmatpush.msra.mxu0 0.0
    %231 = vmatpush.msra.mxu0 0.0
    %232 = vmatpush.msra.mxu0 0.0
    %233 = vmatpush.msra.mxu0 0.0
    %v234 = vand.u32 %v56, 4294901760
    %235 = vmatpush.msra.mxu0 %v234
    %v236 = vand.u32 %v55, 4294901760
    %237 = vmatpush.msra.mxu0 %v236
    %v238 = vand.u32 %v54, 4294901760
    %239 = vmatpush.msra.mxu0 %v238
    %v240 = vand.u32 %v53, 4294901760
    %241 = vmatpush.msra.mxu0 %v240
    %v242 = vand.u32 %v60, 4294901760
    %243 = vmatmul.f32.gmra.mxu0 %v242
    %v244 = vpop.f32.mrf.mxu0
    %v245 = vadd.f32 %v220, %v244
    %246 = vdwg.mxu0
    %247 = vst [vmem:[#allocation8] sm:$0xff] %v245
    // Predicated region
    $region14: #{tpu_custom_call.1} parent=1 // pred_check
      _
    $region15: #{tpu_custom_call.1} parent=1 // pred_check_branch
      %249 = sbr.rel (0) target = $region17
    $region16: #{tpu_custom_call.1} parent=1 // pred_region
      %251 = vsyncadd [#allocation7], 0
      %s253 = sshll.u32 [#allocation8], 4
      %s254 = int_to_ptr.vmem [resolvable:$true] %s253
      %s255 = sshll.u32 %s4, 4
      %s256 = int_to_ptr.hbm [resolvable:$true] %s255
      %258 = dma.vmem_to_hbm [thread:$0]  %s254, 128, %s256, [#allocation7]
    $region17: #{tpu_custom_call.1} parent=1 // pred_fallthru
      _
    // Predicated region
    $region18: #{tpu_custom_call.1} parent=1 // pred_check
      _
    $region19: #{tpu_custom_call.1} parent=1 // pred_check_branch
      %260 = sbr.rel (0) target = $region21
    $region20: #{tpu_custom_call.1} parent=1 // pred_region
      %262 = dma.done [#allocation7], 128
    $region21: #{tpu_custom_call.1} parent=1 // pred_fallthru
      _
    %263 = vsyncpa [#allocation6], 1
    %264 = vsyncpa [#allocation7], 1

</llo_original>
